<compile_context>
chip_gen: v7x
topology: tpu7x:2x2x1
jax: 0.10.0
libtpu: 0.0.40
codegen_flags: <defaults>
</compile_context>

<pallas_src>
import functools

import jax
import jax.numpy as jnp
from jax.experimental import pallas as pl
from jax.experimental.pallas import tpu as pltpu


def gnn_kernel(x_ref, xt_ref, wcat_ref, bcat_ref, o_ref, *, neighbor_num):
    b, n, c = x_ref.shape
    k = neighbor_num

    x = x_ref[...]                                    # (B, N, C) f32
    xt = xt_ref[...]                                  # (B, C, N) f32 (pre-transposed)

    # ---- similarity: si = x @ x^T per batch (no in-kernel transpose) --------
    si = jnp.einsum('bic,bcj->bij', x, xt,
                    preferred_element_type=jnp.float32)          # (B, N, N)

    # ---- adjacency via rank: adj[r,j] = 1 iff si[r,j] >= k-th largest -------
    # rank[r,j] = #entries in row r strictly greater than si[r,j];
    # (rank < k) == "si >= torch.topk(k).values[..., -1]" (ties included).
    si2 = si.reshape(b * n, n)                                   # (B*N, N)
    gt = (si2[:, None, :] > si2[:, :, None]).astype(jnp.float32)  # (B*N, N, N)
    rank = jnp.sum(gt, axis=-1)                                  # (B*N, N)
    adj2 = (rank < float(k)).astype(jnp.float32)                 # (B*N, N)

    # ---- normalize_digraph: D^{-1/2} A D^{-1/2}, applied via row scalings ---
    deg = jnp.sum(adj2, axis=-1, keepdims=True)                  # (B*N, 1), >= k > 0
    dinv = jax.lax.rsqrt(deg)                                    # (B*N, 1)

    # ---- fused U/V Linear: one (B*N, C) @ (C, 2C) MXU call ------------------
    x2d = x.reshape(b * n, c)                                    # (B*N, C)
    uv = jnp.dot(x2d, wcat_ref[...],
                 preferred_element_type=jnp.float32) + bcat_ref[...]  # (B*N, 2C)
    ux = uv[:, :c]                                               # U(x)          (B*N, C)
    vxs = uv[:, c:] * dinv                                       # D^{-1/2} V(x) (B*N, C)

    # ---- aggregate = (D^{-1/2} A D^{-1/2}) @ V(x); z = aggregate + U(x) -----
    agg = jnp.einsum('bij,bjc->bic',
                     adj2.reshape(b, n, n), vxs.reshape(b, n, c),
                     preferred_element_type=jnp.float32)         # (B, N, C)
    z = agg * dinv.reshape(b, n, 1) + ux.reshape(b, n, c)        # (B, N, C)

    # ---- BatchNorm1d(num_classes=N), training mode, weight=1, bias=0 --------
    # Stats per node over (batch, channel); one pass (sum, sum of squares).
    denom = float(b * c)
    s1 = jnp.sum(jnp.sum(z, axis=-1, keepdims=True), axis=0, keepdims=True)      # (1,N,1)
    s2 = jnp.sum(jnp.sum(z * z, axis=-1, keepdims=True), axis=0, keepdims=True)  # (1,N,1)
    mean = s1 / denom
    var = s2 / denom - mean * mean                               # biased variance
    z_hat = (z - mean) * jax.lax.rsqrt(var + 1e-5)

    # ---- residual + ReLU, lane-dense (B, N*C) store -------------------------
    o_ref[...] = jnp.maximum(x + z_hat, 0.0).reshape(b, n * c)


def gnn_forward(x, wu, bu, wv, bv, *, neighbor_num=4):
    b, n, c = x.shape

    # Wrapper-side layout plumbing (cheap, keeps the kernel transpose-free):
    xt = jnp.transpose(x, (0, 2, 1))                             # (B, C, N)
    wcat = jnp.concatenate([wu.T, wv.T], axis=1)                 # (C, 2C): y = x @ W^T
    bcat = jnp.concatenate([bu, bv], axis=0).reshape(1, 2 * c)   # (1, 2C)

    kernel = functools.partial(gnn_kernel, neighbor_num=neighbor_num)

    flops = (2 * b * n * n * c            # similarity
             + 2 * (b * n) * c * (2 * c)  # fused U/V linear
             + 2 * b * n * n * c)         # aggregation
    bytes_accessed = 4 * (x.size + xt.size + wcat.size + bcat.size + b * n * c)

    out_flat = pl.pallas_call(
        kernel,
        out_shape=jax.ShapeDtypeStruct((b, n * c), jnp.float32),
        grid=(1,),
        in_specs=[
            pl.BlockSpec((b, n, c), lambda i: (0, 0, 0)),        # x
            pl.BlockSpec((b, c, n), lambda i: (0, 0, 0)),        # x^T
            pl.BlockSpec((c, 2 * c), lambda i: (0, 0)),          # [U.W^T | V.W^T]
            pl.BlockSpec((1, 2 * c), lambda i: (0, 0)),          # [U.b | V.b]
        ],
        out_specs=pl.BlockSpec((b, n * c), lambda i: (0, 0)),
        compiler_params=pltpu.CompilerParams(
            dimension_semantics=("arbitrary",),
            vmem_limit_bytes=32 * 1024 * 1024,
        ),
        cost_estimate=pl.CostEstimate(
            flops=flops,
            transcendentals=b * n + n,     # degree rsqrt + BN rsqrt
            bytes_accessed=bytes_accessed,
        ),
    )(x, xt, wcat, bcat)

    return out_flat.reshape(b, n, c)


if __name__ == "__main__":
    B, N, C = 2, 8, 32          # batch, num_classes (graph nodes), in_channels
    NEIGHBOR_NUM = 4

    key = jax.random.PRNGKey(0)
    kx, ku, kv, kbu, kbv = jax.random.split(key, 5)

    x = jax.random.normal(kx, (B, N, C), dtype=jnp.float32)

    # U/V weights ~ N(0, sqrt(2/C)) as in the module's __init__;
    # biases use PyTorch Linear's default U(-1/sqrt(C), 1/sqrt(C)).
    std = (2.0 / C) ** 0.5
    wu = std * jax.random.normal(ku, (C, C), dtype=jnp.float32)
    wv = std * jax.random.normal(kv, (C, C), dtype=jnp.float32)
    bound = 1.0 / (C ** 0.5)
    bu = jax.random.uniform(kbu, (C,), minval=-bound, maxval=bound, dtype=jnp.float32)
    bv = jax.random.uniform(kbv, (C,), minval=-bound, maxval=bound, dtype=jnp.float32)

    out = gnn_forward(x, wu, bu, wv, bv, neighbor_num=NEIGHBOR_NUM)
    jax.block_until_ready(out)
    assert out.shape == (B, N, C)
    print("KERNEL_OK")
</pallas_src>

<mosaic_0001>
module attributes {stable_mosaic.version = 11 : i64} {
  func.func @gnn_kernel(%arg0: i32, %arg1: memref<2x8x32xf32, #tpu.memory_space<vmem>>, %arg2: memref<2x32x8xf32, #tpu.memory_space<vmem>>, %arg3: memref<32x64xf32, #tpu.memory_space<vmem>>, %arg4: memref<1x64xf32, #tpu.memory_space<vmem>>, %arg5: memref<2x256xf32, #tpu.memory_space<vmem>>) attributes {dimension_semantics = [#tpu.dimension_semantics<arbitrary>], iteration_bounds = array<i64: 1>, scalar_prefetch = 0 : i64, scratch_operands = 0 : i64, tpu.core_type = #tpu.core_type<tc>, window_params = [{pipeline_mode = #tpu.pipeline_mode<synchronous>, transform_indices = @transform_0, window_bounds = array<i64: 2, 8, 32>}, {pipeline_mode = #tpu.pipeline_mode<synchronous>, transform_indices = @transform_1, window_bounds = array<i64: 2, 32, 8>}, {pipeline_mode = #tpu.pipeline_mode<synchronous>, transform_indices = @transform_2, window_bounds = array<i64: 32, 64>}, {pipeline_mode = #tpu.pipeline_mode<synchronous>, transform_indices = @transform_3, window_bounds = array<i64: 1, 64>}, {pipeline_mode = #tpu.pipeline_mode<synchronous>, transform_indices = @transform_4, window_bounds = array<i64: 2, 256>}]} {
    %c0 = arith.constant 0 : index
    %c0_0 = arith.constant 0 : index
    %c0_1 = arith.constant 0 : index
    %0 = vector.load %arg1[%c0, %c0_0, %c0_1] : memref<2x8x32xf32, #tpu.memory_space<vmem>>, vector<2x8x32xf32>
    %c0_2 = arith.constant 0 : index
    %c0_3 = arith.constant 0 : index
    %c0_4 = arith.constant 0 : index
    %1 = vector.load %arg2[%c0_2, %c0_3, %c0_4] : memref<2x32x8xf32, #tpu.memory_space<vmem>>, vector<2x32x8xf32>
    "tpu.trace_start"() <{level = 10 : i32, message = "bic,bcj->bij"}> : () -> ()
    %cst = arith.constant dense<0.000000e+00> : vector<2x8x8xf32>
    %2 = tpu.matmul %0, %1, %cst {dimension_numbers = #tpu.dot_dimension_numbers<[2], [1], [1], [2], [0, 0, 0, 1, 1, 2], [0], [0]>} : vector<2x8x32xf32>, vector<2x32x8xf32>, vector<2x8x8xf32> -> vector<2x8x8xf32>
    "tpu.trace_stop"() : () -> ()
    %3 = vector.shape_cast %2 : vector<2x8x8xf32> to vector<16x8xf32>
    %4 = vector.shape_cast %3 : vector<16x8xf32> to vector<16x1x8xf32>
    %5 = vector.shape_cast %3 : vector<16x8xf32> to vector<16x8x1xf32>
    %6 = vector.broadcast %4 : vector<16x1x8xf32> to vector<16x8x8xf32>
    %7 = vector.broadcast %5 : vector<16x8x1xf32> to vector<16x8x8xf32>
    %8 = arith.cmpf ogt, %6, %7 : vector<16x8x8xf32>
    %9 = arith.extui %8 : vector<16x8x8xi1> to vector<16x8x8xi32>
    %10 = arith.sitofp %9 : vector<16x8x8xi32> to vector<16x8x8xf32>
    %cst_5 = arith.constant dense<0.000000e+00> : vector<16x8xf32>
    %11 = vector.multi_reduction <add>, %10, %cst_5 [2] : vector<16x8x8xf32> to vector<16x8xf32>
    %cst_6 = arith.constant 4.000000e+00 : f32
    %12 = vector.broadcast %cst_6 : f32 to vector<16x8xf32>
    %13 = arith.cmpf olt, %11, %12 : vector<16x8xf32>
    %14 = arith.extui %13 : vector<16x8xi1> to vector<16x8xi32>
    %15 = arith.sitofp %14 : vector<16x8xi32> to vector<16x8xf32>
    %cst_7 = arith.constant dense<0.000000e+00> : vector<16xf32>
    %16 = vector.multi_reduction <add>, %15, %cst_7 [1] : vector<16x8xf32> to vector<16xf32>
    %17 = vector.shape_cast %16 : vector<16xf32> to vector<16x1xf32>
    %18 = math.rsqrt %17 : vector<16x1xf32>
    %19 = vector.shape_cast %0 : vector<2x8x32xf32> to vector<16x32xf32>
    %c0_8 = arith.constant 0 : index
    %c0_9 = arith.constant 0 : index
    %20 = vector.load %arg3[%c0_8, %c0_9] : memref<32x64xf32, #tpu.memory_space<vmem>>, vector<32x64xf32>
    %cst_10 = arith.constant dense<0.000000e+00> : vector<16x64xf32>
    %21 = tpu.matmul %19, %20, %cst_10 {dimension_numbers = #tpu.dot_dimension_numbers<[1], [0], [0], [1], [0, 0, 1, 1], [], []>} : vector<16x32xf32>, vector<32x64xf32>, vector<16x64xf32> -> vector<16x64xf32>
    %c0_11 = arith.constant 0 : index
    %c0_12 = arith.constant 0 : index
    %22 = vector.load %arg4[%c0_11, %c0_12] : memref<1x64xf32, #tpu.memory_space<vmem>>, vector<1x64xf32>
    %23 = vector.broadcast %22 : vector<1x64xf32> to vector<16x64xf32>
    %24 = arith.addf %21, %23 : vector<16x64xf32>
    %25 = vector.extract_strided_slice %24 {offsets = [0, 0], sizes = [16, 32], strides = [1, 1]} : vector<16x64xf32> to vector<16x32xf32>
    %26 = vector.extract_strided_slice %24 {offsets = [0, 32], sizes = [16, 32], strides = [1, 1]} : vector<16x64xf32> to vector<16x32xf32>
    %27 = vector.broadcast %18 : vector<16x1xf32> to vector<16x32xf32>
    %28 = arith.mulf %26, %27 : vector<16x32xf32>
    %29 = vector.shape_cast %15 : vector<16x8xf32> to vector<2x8x8xf32>
    %30 = vector.shape_cast %28 : vector<16x32xf32> to vector<2x8x32xf32>
    "tpu.trace_start"() <{level = 10 : i32, message = "bij,bjc->bic"}> : () -> ()
    %cst_13 = arith.constant dense<0.000000e+00> : vector<2x8x32xf32>
    %31 = tpu.matmul %29, %30, %cst_13 {dimension_numbers = #tpu.dot_dimension_numbers<[2], [1], [1], [2], [0, 0, 0, 1, 1, 2], [0], [0]>} : vector<2x8x8xf32>, vector<2x8x32xf32>, vector<2x8x32xf32> -> vector<2x8x32xf32>
    "tpu.trace_stop"() : () -> ()
    %32 = vector.shape_cast %18 : vector<16x1xf32> to vector<2x8x1xf32>
    %33 = vector.broadcast %32 : vector<2x8x1xf32> to vector<2x8x32xf32>
    %34 = arith.mulf %31, %33 : vector<2x8x32xf32>
    %35 = vector.shape_cast %25 : vector<16x32xf32> to vector<2x8x32xf32>
    %36 = arith.addf %34, %35 : vector<2x8x32xf32>
    %cst_14 = arith.constant dense<0.000000e+00> : vector<2x8xf32>
    %37 = vector.multi_reduction <add>, %36, %cst_14 [2] : vector<2x8x32xf32> to vector<2x8xf32>
    %38 = vector.shape_cast %37 : vector<2x8xf32> to vector<2x8x1xf32>
    %cst_15 = arith.constant dense<0.000000e+00> : vector<8x1xf32>
    %39 = vector.multi_reduction <add>, %38, %cst_15 [0] : vector<2x8x1xf32> to vector<8x1xf32>
    %40 = vector.shape_cast %39 : vector<8x1xf32> to vector<1x8x1xf32>
    %41 = arith.mulf %36, %36 : vector<2x8x32xf32>
    %cst_16 = arith.constant dense<0.000000e+00> : vector<2x8xf32>
    %42 = vector.multi_reduction <add>, %41, %cst_16 [2] : vector<2x8x32xf32> to vector<2x8xf32>
    %43 = vector.shape_cast %42 : vector<2x8xf32> to vector<2x8x1xf32>
    %cst_17 = arith.constant dense<0.000000e+00> : vector<8x1xf32>
    %44 = vector.multi_reduction <add>, %43, %cst_17 [0] : vector<2x8x1xf32> to vector<8x1xf32>
    %45 = vector.shape_cast %44 : vector<8x1xf32> to vector<1x8x1xf32>
    %cst_18 = arith.constant 6.400000e+01 : f32
    %46 = vector.broadcast %cst_18 : f32 to vector<1x8x1xf32>
    %47 = arith.divf %40, %46 : vector<1x8x1xf32>
    %cst_19 = arith.constant 6.400000e+01 : f32
    %48 = vector.broadcast %cst_19 : f32 to vector<1x8x1xf32>
    %49 = arith.divf %45, %48 : vector<1x8x1xf32>
    %50 = arith.mulf %47, %47 : vector<1x8x1xf32>
    %51 = arith.subf %49, %50 : vector<1x8x1xf32>
    %52 = vector.broadcast %47 : vector<1x8x1xf32> to vector<2x8x32xf32>
    %53 = arith.subf %36, %52 : vector<2x8x32xf32>
    %cst_20 = arith.constant 9.99999974E-6 : f32
    %54 = vector.broadcast %cst_20 : f32 to vector<1x8x1xf32>
    %55 = arith.addf %51, %54 : vector<1x8x1xf32>
    %56 = math.rsqrt %55 : vector<1x8x1xf32>
    %57 = vector.broadcast %56 : vector<1x8x1xf32> to vector<2x8x32xf32>
    %58 = arith.mulf %53, %57 : vector<2x8x32xf32>
    %59 = arith.addf %0, %58 : vector<2x8x32xf32>
    %cst_21 = arith.constant 0.000000e+00 : f32
    %60 = vector.broadcast %cst_21 : f32 to vector<2x8x32xf32>
    %61 = arith.maximumf %59, %60 : vector<2x8x32xf32>
    %62 = vector.shape_cast %61 : vector<2x8x32xf32> to vector<2x256xf32>
    %c0_22 = arith.constant 0 : index
    %c0_23 = arith.constant 0 : index
    %63 = vector.load %arg5[%c0_22, %c0_23] : memref<2x256xf32, #tpu.memory_space<vmem>>, vector<2x256xf32>
    tpu.vector_store %arg5[%c0_22, %c0_23], %62 {strides = array<i32>} : memref<2x256xf32, #tpu.memory_space<vmem>>, vector<2x256xf32>,
    return
  }
  func.func @transform_0(%arg0: i32) -> (i32, i32, i32) {
    %c0_i32 = arith.constant 0 : i32
    %c0_i32_0 = arith.constant 0 : i32
    %c0_i32_1 = arith.constant 0 : i32
    %c0_i32_2 = arith.constant 0 : i32
    return %c0_i32, %c0_i32_0, %c0_i32_1 : i32, i32, i32
  }
  func.func @transform_1(%arg0: i32) -> (i32, i32, i32) {
    %c0_i32 = arith.constant 0 : i32
    %c0_i32_0 = arith.constant 0 : i32
    %c0_i32_1 = arith.constant 0 : i32
    %c0_i32_2 = arith.constant 0 : i32
    return %c0_i32, %c0_i32_0, %c0_i32_1 : i32, i32, i32
  }
  func.func @transform_2(%arg0: i32) -> (i32, i32) {
    %c0_i32 = arith.constant 0 : i32
    %c0_i32_0 = arith.constant 0 : i32
    %c0_i32_1 = arith.constant 0 : i32
    return %c0_i32, %c0_i32_0 : i32, i32
  }
  func.func @transform_3(%arg0: i32) -> (i32, i32) {
    %c0_i32 = arith.constant 0 : i32
    %c0_i32_0 = arith.constant 0 : i32
    %c0_i32_1 = arith.constant 0 : i32
    return %c0_i32, %c0_i32_0 : i32, i32
  }
  func.func @transform_4(%arg0: i32) -> (i32, i32) {
    %c0_i32 = arith.constant 0 : i32
    %c0_i32_0 = arith.constant 0 : i32
    %c0_i32_1 = arith.constant 0 : i32
    return %c0_i32, %c0_i32_0 : i32, i32
  }
}

</mosaic_0001>

<llo_original>
// kernel: tpu_custom_call.1
$region0: #{tpu_custom_call.1}
  #allocation0 [shape = 'u32[]', space=smem, size = 0x4, offset = 0x4, fixed_abs, tag = 'smem constant byte address 0x4 - core index']
  #allocation1 [shape = 'u32[144,128]{1,0:T(1,128)}', space=vmem, size = 0x12000, scoped, tag = 'internal scratch']
  %s0 = inlined_call_operand.vmem [shape: f32[2,8,32], index: 0, kind: input, shape index: {}]
  %s1 = inlined_call_operand.vmem [shape: f32[2,32,8], index: 1, kind: input, shape index: {}]
  %s2 = inlined_call_operand.vmem [shape: f32[32,64], index: 2, kind: input, shape index: {}]
  %s3 = inlined_call_operand.vmem [shape: f32[1,64], index: 3, kind: input, shape index: {}]
  %s4 = inlined_call_operand.hbm [shape: f32[2,256], index: 4, kind: output, shape index: {}]
  %s5 = sld [smem:[#allocation0]]
  $region26: #{tpu_custom_call.1} parent=0
    _
  %s7 = ssub.s32 1, %s5
  %s8 = scalar_select 0, %s7, %s5
  $region1: #{tpu_custom_call.1} parent=0
    #allocation2 [shape = 'u8[2048]{0}', space=vmem, size = 0x800, scoped, tag = 'output window, operand 0, single buffered']
    #allocation3 [shape = 's32[1]{0}', space=sflag, size = 0x4, scoped, tag = 'scoped memory for tpu_custom_call.1']
    %9 = vsyncpa [#allocation3], 0
    // Predicated region
    $region2: #{tpu_custom_call.1} parent=1 // pred_check
      _
    $region3: #{tpu_custom_call.1} parent=1 // pred_check_branch
      %11 = sbr.rel (0) target = $region5
    $region4: #{tpu_custom_call.1} parent=1 // pred_region
      _
    $region5: #{tpu_custom_call.1} parent=1 // pred_fallthru
      _
    // Predicated region
    $region6: #{tpu_custom_call.1} parent=1 // pred_check
      _
    $region7: #{tpu_custom_call.1} parent=1 // pred_check_branch
      %13 = sbr.rel (0) target = $region9
    $region8: #{tpu_custom_call.1} parent=1 // pred_region
      _
    $region9: #{tpu_custom_call.1} parent=1 // pred_fallthru
      _
    // Predicated region
    $region10: #{tpu_custom_call.1} parent=1 // pred_check
      _
    $region11: #{tpu_custom_call.1} parent=1 // pred_check_branch
      %15 = sbr.rel (0) target = $region13
    $region12: #{tpu_custom_call.1} parent=1 // pred_region
      _
    $region13: #{tpu_custom_call.1} parent=1 // pred_fallthru
      _
    // Predicated region
    $region14: #{tpu_custom_call.1} parent=1 // pred_check
      _
    $region15: #{tpu_custom_call.1} parent=1 // pred_check_branch
      %17 = sbr.rel (0) target = $region17
    $region16: #{tpu_custom_call.1} parent=1 // pred_region
      _
    $region17: #{tpu_custom_call.1} parent=1 // pred_fallthru
      _
    %v18 = vld [vmem:[%s0] sm:$0xff]
    %v19 = vld [vmem:[%s0 + $0x8] sm:$0xff]
    %v20 = vld [vmem:[%s1] sm:$0xff]
    %v21 = vld [vmem:[%s1 + $0x8] sm:$0xff]
    %v22 = vld [vmem:[%s1 + $0x10] sm:$0xff]
    %v23 = vld [vmem:[%s1 + $0x18] sm:$0xff]
    %v24 = vld [vmem:[%s1 + $0x20] sm:$0xff]
    %v25 = vld [vmem:[%s1 + $0x28] sm:$0xff]
    %v26 = vld [vmem:[%s1 + $0x30] sm:$0xff]
    %v27 = vld [vmem:[%s1 + $0x38] sm:$0xff]
    %vm28 = vcmask 261120
    %v30 = vsel %vm28, %v18, 0
    %32 = vmatprep.subr.mxu0 0.0
    %33 = vmatpush1.msra.mxu0 %v20
    %34 = vmatprep.subr.mxu0 0.0
    %35 = vmatpush1.msra.mxu0 %v21
    %36 = vmatprep.subr.mxu0 0.0
    %37 = vmatpush1.msra.mxu0 %v22
    %38 = vmatprep.subr.mxu0 0.0
    %39 = vmatpush1.msra.mxu0 %v23
    %40 = vmatprep.subr.mxu0 0.0
    %41 = vmatpush1.msra.mxu0 0.0
    %42 = vmatprep.subr.mxu0 0.0
    %43 = vmatpush1.msra.mxu0 0.0
    %44 = vmatprep.subr.mxu0 0.0
    %45 = vmatpush1.msra.mxu0 0.0
    %46 = vmatprep.subr.mxu0 0.0
    %47 = vmatpush1.msra.mxu0 0.0
    %48 = vmatprep.subr.mxu0 0.0
    %49 = vmatpush1.msra.mxu0 0.0
    %50 = vmatprep.subr.mxu0 0.0
    %51 = vmatpush1.msra.mxu0 0.0
    %52 = vmatprep.subr.mxu0 0.0
    %53 = vmatpush1.msra.mxu0 0.0
    %54 = vmatprep.subr.mxu0 0.0
    %55 = vmatpush1.msra.mxu0 0.0
    %56 = vmatprep.subr.mxu0 0.0
    %57 = vmatpush1.msra.mxu0 0.0
    %58 = vmatprep.subr.mxu0 0.0
    %59 = vmatpush1.msra.mxu0 0.0
    %60 = vmatprep.subr.mxu0 0.0
    %61 = vmatpush1.msra.mxu0 0.0
    %62 = vmatprep.subr.mxu0 0.0
    %63 = vmatpush1.msra.mxu0 0.0
    %64 = vmatprep.subr.mxu0 0.0
    %65 = vmatpush1.msra.mxu0 0.0
    %66 = vmatprep.subr.mxu0 0.0
    %67 = vmatpush1.msra.mxu0 0.0
    %68 = vmatprep.subr.mxu0 0.0
    %69 = vmatpush1.msra.mxu0 0.0
    %70 = vmatprep.subr.mxu0 0.0
    %71 = vmatpush1.msra.mxu0 0.0
    %72 = vmatprep.subr.mxu0 0.0
    %73 = vmatpush1.msra.mxu0 0.0
    %74 = vmatprep.subr.mxu0 0.0
    %75 = vmatpush1.msra.mxu0 0.0
    %76 = vmatprep.subr.mxu0 0.0
    %77 = vmatpush1.msra.mxu0 0.0
    %78 = vmatprep.subr.mxu0 0.0
    %79 = vmatpush1.msra.mxu0 0.0
    %80 = vmatprep.subr.mxu0 0.0
    %81 = vmatpush1.msra.mxu0 0.0
    %82 = vmatprep.subr.mxu0 0.0
    %83 = vmatpush1.msra.mxu0 0.0
    %84 = vmatprep.subr.mxu0 0.0
    %85 = vmatpush1.msra.mxu0 0.0
    %86 = vmatprep.subr.mxu0 0.0
    %87 = vmatpush1.msra.mxu0 0.0
    %88 = vmatprep.subr.mxu0 0.0
    %89 = vmatpush1.msra.mxu0 0.0
    %90 = vmatprep.subr.mxu0 0.0
    %91 = vmatpush1.msra.mxu0 0.0
    %92 = vmatprep.subr.mxu0 0.0
    %93 = vmatpush1.msra.mxu0 0.0
    %94 = vmatprep.subr.mxu0 0.0
    %95 = vmatpush1.msra.mxu0 0.0
    %96 = vmatprep.mubr.f32.mxu0 0.0
    %97 = vmatmul.mubr.f32.gmra.mrb[0].mxu0 %v30
    %v98 = vpop.f32.mrb[0].mxu0
    %v99 = vadd.f32 0.0, %v98
    %v100 = vpop.f32.mrb[0].mxu0
    %101 = vdwg.mxu0
    %v103 = vsel %vm28, %v19, 0
    %105 = vmatprep.subr.mxu0 0.0
    %106 = vmatpush1.msra.mxu0 %v24
    %107 = vmatprep.subr.mxu0 0.0
    %108 = vmatpush1.msra.mxu0 %v25
    %109 = vmatprep.subr.mxu0 0.0
    %110 = vmatpush1.msra.mxu0 %v26
    %111 = vmatprep.subr.mxu0 0.0
    %112 = vmatpush1.msra.mxu0 %v27
    %113 = vmatprep.subr.mxu0 0.0
    %114 = vmatpush1.msra.mxu0 0.0
    %115 = vmatprep.subr.mxu0 0.0
    %116 = vmatpush1.msra.mxu0 0.0
    %117 = vmatprep.subr.mxu0 0.0
    %118 = vmatpush1.msra.mxu0 0.0
    %119 = vmatprep.subr.mxu0 0.0
    %120 = vmatpush1.msra.mxu0 0.0
    %121 = vmatprep.subr.mxu0 0.0
    %122 = vmatpush1.msra.mxu0 0.0
    %123 = vmatprep.subr.mxu0 0.0
    %124 = vmatpush1.msra.mxu0 0.0
    %125 = vmatprep.subr.mxu0 0.0
    %126 = vmatpush1.msra.mxu0 0.0
    %127 = vmatprep.subr.mxu0 0.0
    %128 = vmatpush1.msra.mxu0 0.0
    %129 = vmatprep.subr.mxu0 0.0
    %130 = vmatpush1.msra.mxu0 0.0
    %131 = vmatprep.subr.mxu0 0.0
    %132 = vmatpush1.msra.mxu0 0.0
    %133 = vmatprep.subr.mxu0 0.0
    %134 = vmatpush1.msra.mxu0 0.0
    %135 = vmatprep.subr.mxu0 0.0
    %136 = vmatpush1.msra.mxu0 0.0
    %137 = vmatprep.subr.mxu0 0.0
    %138 = vmatpush1.msra.mxu0 0.0
    %139 = vmatprep.subr.mxu0 0.0
    %140 = vmatpush1.msra.mxu0 0.0
    %141 = vmatprep.subr.mxu0 0.0
    %142 = vmatpush1.msra.mxu0 0.0
    %143 = vmatprep.subr.mxu0 0.0
    %144 = vmatpush1.msra.mxu0 0.0
    %145 = vmatprep.subr.mxu0 0.0
    %146 = vmatpush1.msra.mxu0 0.0
    %147 = vmatprep.subr.mxu0 0.0
    %148 = vmatpush1.msra.mxu0 0.0
    %149 = vmatprep.subr.mxu0 0.0
    %150 = vmatpush1.msra.mxu0 0.0
    %151 = vmatprep.subr.mxu0 0.0
    %152 = vmatpush1.msra.mxu0 0.0
    %153 = vmatprep.subr.mxu0 0.0
    %154 = vmatpush1.msra.mxu0 0.0
    %155 = vmatprep.subr.mxu0 0.0
    %156 = vmatpush1.msra.mxu0 0.0
    %157 = vmatprep.subr.mxu0 0.0
    %158 = vmatpush1.msra.mxu0 0.0
    %159 = vmatprep.subr.mxu0 0.0
    %160 = vmatpush1.msra.mxu0 0.0
    %161 = vmatprep.subr.mxu0 0.0
    %162 = vmatpush1.msra.mxu0 0.0
    %163 = vmatprep.subr.mxu0 0.0
    %164 = vmatpush1.msra.mxu0 0.0
    %165 = vmatprep.subr.mxu0 0.0
    %166 = vmatpush1.msra.mxu0 0.0
    %167 = vmatprep.subr.mxu0 0.0
    %168 = vmatpush1.msra.mxu0 0.0
    %169 = vmatprep.mubr.f32.mxu0 0.0
    %170 = vmatmul.mubr.f32.gmra.mrb[0].mxu0 %v103
    %v171 = vpop.f32.mrb[0].mxu0
    %v172 = vadd.f32 0.0, %v171
    %v173 = vpop.f32.mrb[0].mxu0
    %174 = vdwg.mxu0
    %v177 = vcombine.high %v99, %v99
    %v179 = vunpack.c.l.s4 1966171168
    %v180 = vunpack.c.0.s8 %v179
    %v181 = vlaneseq
    %v182 = vshrl.u32 %v181, 7
    %v183 = vsub.s32 %v180, %v182
    %v184 = vrot.slane %v99, %v183
    %v186 = vunpack.c.l.s4 1966171168
    %v187 = vunpack.c.0.s8 %v186
    %v188 = vlaneseq
    %v189 = vshrl.u32 %v188, 7
    %v190 = vsub.s32 %v187, %v189
    %v191 = vrot.slane %v177, %v190
    %v192 = vcombine.high %v184, %v184
    %v193 = vcombine.high %v191, %v191
    %v195 = vunpack.c.l.s4 1966171168
    %v196 = vunpack.c.0.s8 %v195
    %v197 = vlaneseq
    %v198 = vshrl.u32 %v197, 7
    %v199 = vsub.s32 %v196, %v198
    %v200 = vrot.slane %v184, %v199
    %v202 = vunpack.c.l.s4 1966171168
    %v203 = vunpack.c.0.s8 %v202
    %v204 = vlaneseq
    %v205 = vshrl.u32 %v204, 7
    %v206 = vsub.s32 %v203, %v205
    %v207 = vrot.slane %v191, %v206
    %v209 = vunpack.c.l.s4 1966171168
    %v210 = vunpack.c.0.s8 %v209
    %v211 = vlaneseq
    %v212 = vshrl.u32 %v211, 7
    %v213 = vsub.s32 %v210, %v212
    %v214 = vrot.slane %v192, %v213
    %v216 = vunpack.c.l.s4 1966171168
    %v217 = vunpack.c.0.s8 %v216
    %v218 = vlaneseq
    %v219 = vshrl.u32 %v218, 7
    %v220 = vsub.s32 %v217, %v219
    %v221 = vrot.slane %v193, %v220
    %v222 = vcombine.high %v200, %v200
    %v223 = vcombine.high %v207, %v207
    %v224 = vcombine.high %v214, %v214
    %v225 = vcombine.high %v221, %v221
    %v226 = vcombine.high %v172, %v172
    %v228 = vunpack.c.l.s4 1966171168
    %v229 = vunpack.c.0.s8 %v228
    %v230 = vlaneseq
    %v231 = vshrl.u32 %v230, 7
    %v232 = vsub.s32 %v229, %v231
    %v233 = vrot.slane %v172, %v232
    %v235 = vunpack.c.l.s4 1966171168
    %v236 = vunpack.c.0.s8 %v235
    %v237 = vlaneseq
    %v238 = vshrl.u32 %v237, 7
    %v239 = vsub.s32 %v236, %v238
    %v240 = vrot.slane %v226, %v239
    %v241 = vcombine.high %v233, %v233
    %v242 = vcombine.high %v240, %v240
    %v244 = vunpack.c.l.s4 1966171168
    %v245 = vunpack.c.0.s8 %v244
    %v246 = vlaneseq
    %v247 = vshrl.u32 %v246, 7
    %v248 = vsub.s32 %v245, %v247
    %v249 = vrot.slane %v233, %v248
    %v251 = vunpack.c.l.s4 1966171168
    %v252 = vunpack.c.0.s8 %v251
    %v253 = vlaneseq
    %v254 = vshrl.u32 %v253, 7
    %v255 = vsub.s32 %v252, %v254
    %v256 = vrot.slane %v240, %v255
    %v258 = vunpack.c.l.s4 1966171168
    %v259 = vunpack.c.0.s8 %v258
    %v260 = vlaneseq
    %v261 = vshrl.u32 %v260, 7
    %v262 = vsub.s32 %v259, %v261
    %v263 = vrot.slane %v241, %v262
    %v265 = vunpack.c.l.s4 1966171168
    %v266 = vunpack.c.0.s8 %v265
    %v267 = vlaneseq
    %v268 = vshrl.u32 %v267, 7
    %v269 = vsub.s32 %v266, %v268
    %v270 = vrot.slane %v242, %v269
    %v271 = vcombine.high %v249, %v249
    %v272 = vcombine.high %v256, %v256
    %v273 = vcombine.high %v263, %v263
    %v274 = vcombine.high %v270, %v270
    %v275 = vlaneseq
    %v276 = vshrl.u32 %v275, 7
    %v277 = vsub.s32 0, %v276
    %v278 = vrot.slane %v99, %v277
    %280 = vbcast.lane.b32.xlu0 %v278, 256
    %v281 = vpop.permute.xlu0 %280
    %v282 = vlaneseq
    %v283 = vshrl.u32 %v282, 7
    %v284 = vsub.s32 1, %v283
    %v285 = vrot.slane %v99, %v284
    %287 = vbcast.lane.b32.xlu0 %v285, 256
    %v288 = vpop.permute.xlu0 %287
    %v289 = vlaneseq
    %v290 = vshrl.u32 %v289, 7
    %v291 = vsub.s32 2, %v290
    %v292 = vrot.slane %v99, %v291
    %294 = vbcast.lane.b32.xlu0 %v292, 256
    %v295 = vpop.permute.xlu0 %294
    %v296 = vlaneseq
    %v297 = vshrl.u32 %v296, 7
    %v298 = vsub.s32 3, %v297
    %v299 = vrot.slane %v99, %v298
    %301 = vbcast.lane.b32.xlu0 %v299, 256
    %v302 = vpop.permute.xlu0 %301
    %v303 = vlaneseq
    %v304 = vshrl.u32 %v303, 7
    %v305 = vsub.s32 4, %v304
    %v306 = vrot.slane %v99, %v305
    %308 = vbcast.lane.b32.xlu0 %v306, 256
    %v309 = vpop.permute.xlu0 %308
    %v310 = vlaneseq
    %v311 = vshrl.u32 %v310, 7
    %v312 = vsub.s32 5, %v311
    %v313 = vrot.slane %v99, %v312
    %315 = vbcast.lane.b32.xlu0 %v313, 256
    %v316 = vpop.permute.xlu0 %315
    %v317 = vlaneseq
    %v318 = vshrl.u32 %v317, 7
    %v319 = vsub.s32 6, %v318
    %v320 = vrot.slane %v99, %v319
    %322 = vbcast.lane.b32.xlu0 %v320, 256
    %v323 = vpop.permute.xlu0 %322
    %v324 = vlaneseq
    %v325 = vshrl.u32 %v324, 7
    %v326 = vsub.s32 7, %v325
    %v327 = vrot.slane %v99, %v326
    %329 = vbcast.lane.b32.xlu0 %v327, 256
    %v330 = vpop.permute.xlu0 %329
    %v331 = vlaneseq
    %v332 = vshrl.u32 %v331, 7
    %v333 = vsub.s32 0, %v332
    %v334 = vrot.slane %v172, %v333
    %336 = vbcast.lane.b32.xlu0 %v334, 256
    %v337 = vpop.permute.xlu0 %336
    %v338 = vlaneseq
    %v339 = vshrl.u32 %v338, 7
    %v340 = vsub.s32 1, %v339
    %v341 = vrot.slane %v172, %v340
    %343 = vbcast.lane.b32.xlu0 %v341, 256
    %v344 = vpop.permute.xlu0 %343
    %v345 = vlaneseq
    %v346 = vshrl.u32 %v345, 7
    %v347 = vsub.s32 2, %v346
    %v348 = vrot.slane %v172, %v347
    %350 = vbcast.lane.b32.xlu0 %v348, 256
    %v351 = vpop.permute.xlu0 %350
    %v352 = vlaneseq
    %v353 = vshrl.u32 %v352, 7
    %v354 = vsub.s32 3, %v353
    %v355 = vrot.slane %v172, %v354
    %357 = vbcast.lane.b32.xlu0 %v355, 256
    %v358 = vpop.permute.xlu0 %357
    %v359 = vlaneseq
    %v360 = vshrl.u32 %v359, 7
    %v361 = vsub.s32 4, %v360
    %v362 = vrot.slane %v172, %v361
    %364 = vbcast.lane.b32.xlu0 %v362, 256
    %v365 = vpop.permute.xlu0 %364
    %v366 = vlaneseq
    %v367 = vshrl.u32 %v366, 7
    %v368 = vsub.s32 5, %v367
    %v369 = vrot.slane %v172, %v368
    %371 = vbcast.lane.b32.xlu0 %v369, 256
    %v372 = vpop.permute.xlu0 %371
    %v373 = vlaneseq
    %v374 = vshrl.u32 %v373, 7
    %v375 = vsub.s32 6, %v374
    %v376 = vrot.slane %v172, %v375
    %378 = vbcast.lane.b32.xlu0 %v376, 256
    %v379 = vpop.permute.xlu0 %378
    %v380 = vlaneseq
    %v381 = vshrl.u32 %v380, 7
    %v382 = vsub.s32 7, %v381
    %v383 = vrot.slane %v172, %v382
    %385 = vbcast.lane.b32.xlu0 %v383, 256
    %v386 = vpop.permute.xlu0 %385
    %v387 = vlaneseq
    %v388 = vshrl.u32 %v387, 7
    %v389 = vsub.s32 0, %v388
    %v390 = vrot.slane %v200, %v389
    %v391 = vlaneseq
    %v392 = vshrl.u32 %v391, 7
    %v393 = vsub.s32 0, %v392
    %v394 = vrot.slane %v214, %v393
    %v395 = vlaneseq
    %v396 = vshrl.u32 %v395, 7
    %v397 = vsub.s32 0, %v396
    %v398 = vrot.slane %v222, %v397
    %v399 = vlaneseq
    %v400 = vshrl.u32 %v399, 7
    %v401 = vsub.s32 0, %v400
    %v402 = vrot.slane %v224, %v401
    %v403 = vlaneseq
    %v404 = vshrl.u32 %v403, 7
    %v405 = vsub.s32 0, %v404
    %v406 = vrot.slane %v207, %v405
    %v407 = vlaneseq
    %v408 = vshrl.u32 %v407, 7
    %v409 = vsub.s32 0, %v408
    %v410 = vrot.slane %v221, %v409
    %v411 = vlaneseq
    %v412 = vshrl.u32 %v411, 7
    %v413 = vsub.s32 0, %v412
    %v414 = vrot.slane %v223, %v413
    %v415 = vlaneseq
    %v416 = vshrl.u32 %v415, 7
    %v417 = vsub.s32 0, %v416
    %v418 = vrot.slane %v225, %v417
    %v419 = vlaneseq
    %v420 = vshrl.u32 %v419, 7
    %v421 = vsub.s32 0, %v420
    %v422 = vrot.slane %v249, %v421
    %v423 = vlaneseq
    %v424 = vshrl.u32 %v423, 7
    %v425 = vsub.s32 0, %v424
    %v426 = vrot.slane %v263, %v425
    %v427 = vlaneseq
    %v428 = vshrl.u32 %v427, 7
    %v429 = vsub.s32 0, %v428
    %v430 = vrot.slane %v271, %v429
    %v431 = vlaneseq
    %v432 = vshrl.u32 %v431, 7
    %v433 = vsub.s32 0, %v432
    %v434 = vrot.slane %v273, %v433
    %v435 = vlaneseq
    %v436 = vshrl.u32 %v435, 7
    %v437 = vsub.s32 0, %v436
    %v438 = vrot.slane %v256, %v437
    %v439 = vlaneseq
    %v440 = vshrl.u32 %v439, 7
    %v441 = vsub.s32 0, %v440
    %v442 = vrot.slane %v270, %v441
    %v443 = vlaneseq
    %v444 = vshrl.u32 %v443, 7
    %v445 = vsub.s32 0, %v444
    %v446 = vrot.slane %v272, %v445
    %v447 = vlaneseq
    %v448 = vshrl.u32 %v447, 7
    %v449 = vsub.s32 0, %v448
    %v450 = vrot.slane %v274, %v449
    %vm467 = vcmp.gt.f32.partialorder %v390, %v281
    %vm468 = vcmp.gt.f32.partialorder %v394, %v288
    %vm469 = vcmp.gt.f32.partialorder %v398, %v295
    %vm470 = vcmp.gt.f32.partialorder %v402, %v302
    %vm471 = vcmp.gt.f32.partialorder %v406, %v309
    %vm472 = vcmp.gt.f32.partialorder %v410, %v316
    %vm473 = vcmp.gt.f32.partialorder %v414, %v323
    %vm474 = vcmp.gt.f32.partialorder %v418, %v330
    %vm475 = vcmp.gt.f32.partialorder %v422, %v337
    %vm476 = vcmp.gt.f32.partialorder %v426, %v344
    %vm477 = vcmp.gt.f32.partialorder %v430, %v351
    %vm478 = vcmp.gt.f32.partialorder %v434, %v358
    %vm479 = vcmp.gt.f32.partialorder %v438, %v365
    %vm480 = vcmp.gt.f32.partialorder %v442, %v372
    %vm481 = vcmp.gt.f32.partialorder %v446, %v379
    %vm482 = vcmp.gt.f32.partialorder %v450, %v386
    %v483 = vsel %vm467, 1, 0
    %v484 = vsel %vm468, 1, 0
    %v485 = vsel %vm469, 1, 0
    %v486 = vsel %vm470, 1, 0
    %v487 = vsel %vm471, 1, 0
    %v488 = vsel %vm472, 1, 0
    %v489 = vsel %vm473, 1, 0
    %v490 = vsel %vm474, 1, 0
    %v491 = vsel %vm475, 1, 0
    %v492 = vsel %vm476, 1, 0
    %v493 = vsel %vm477, 1, 0
    %v494 = vsel %vm478, 1, 0
    %v495 = vsel %vm479, 1, 0
    %v496 = vsel %vm480, 1, 0
    %v497 = vsel %vm481, 1, 0
    %v498 = vsel %vm482, 1, 0
    %v499 = vcvt.s32.f32 %v483
    %v500 = vcvt.s32.f32 %v484
    %v501 = vcvt.s32.f32 %v485
    %v502 = vcvt.s32.f32 %v486
    %v503 = vcvt.s32.f32 %v487
    %v504 = vcvt.s32.f32 %v488
    %v505 = vcvt.s32.f32 %v489
    %v506 = vcvt.s32.f32 %v490
    %v507 = vcvt.s32.f32 %v491
    %v508 = vcvt.s32.f32 %v492
    %v509 = vcvt.s32.f32 %v493
    %v510 = vcvt.s32.f32 %v494
    %v511 = vcvt.s32.f32 %v495
    %v512 = vcvt.s32.f32 %v496
    %v513 = vcvt.s32.f32 %v497
    %v514 = vcvt.s32.f32 %v498
    %vm515 = vcmask 64512
    %v516 = vsel %vm515, %v499, 0.0
    %517 = vadd.xlane.f32.xlu0 %v516
    %v518 = vpop.xlane.xlu0 %517
    %v519 = vsel %vm515, %v500, 0.0
    %520 = vadd.xlane.f32.xlu0 %v519
    %v521 = vpop.xlane.xlu0 %520
    %v522 = vsel %vm515, %v501, 0.0
    %523 = vadd.xlane.f32.xlu0 %v522
    %v524 = vpop.xlane.xlu0 %523
    %v525 = vsel %vm515, %v502, 0.0
    %526 = vadd.xlane.f32.xlu0 %v525
    %v527 = vpop.xlane.xlu0 %526
    %v528 = vsel %vm515, %v503, 0.0
    %529 = vadd.xlane.f32.xlu0 %v528
    %v530 = vpop.xlane.xlu0 %529
    %v531 = vsel %vm515, %v504, 0.0
    %532 = vadd.xlane.f32.xlu0 %v531
    %v533 = vpop.xlane.xlu0 %532
    %v534 = vsel %vm515, %v505, 0.0
    %535 = vadd.xlane.f32.xlu0 %v534
    %v536 = vpop.xlane.xlu0 %535
    %v537 = vsel %vm515, %v506, 0.0
    %538 = vadd.xlane.f32.xlu0 %v537
    %v539 = vpop.xlane.xlu0 %538
    %v540 = vsel %vm515, %v507, 0.0
    %541 = vadd.xlane.f32.xlu0 %v540
    %v542 = vpop.xlane.xlu0 %541
    %v543 = vsel %vm515, %v508, 0.0
    %544 = vadd.xlane.f32.xlu0 %v543
    %v545 = vpop.xlane.xlu0 %544
    %v546 = vsel %vm515, %v509, 0.0
    %547 = vadd.xlane.f32.xlu0 %v546
    %v548 = vpop.xlane.xlu0 %547
    %v549 = vsel %vm515, %v510, 0.0
    %550 = vadd.xlane.f32.xlu0 %v549
    %v551 = vpop.xlane.xlu0 %550
    %v552 = vsel %vm515, %v511, 0.0
    %553 = vadd.xlane.f32.xlu0 %v552
    %v554 = vpop.xlane.xlu0 %553
    %v555 = vsel %vm515, %v512, 0.0
    %556 = vadd.xlane.f32.xlu0 %v555
    %v557 = vpop.xlane.xlu0 %556
    %v558 = vsel %vm515, %v513, 0.0
    %559 = vadd.xlane.f32.xlu0 %v558
    %v560 = vpop.xlane.xlu0 %559
    %v561 = vsel %vm515, %v514, 0.0
    %562 = vadd.xlane.f32.xlu0 %v561
    %v563 = vpop.xlane.xlu0 %562
    %vm564 = vcmp.lt.f32.partialorder %v518, 4.0
    %vm565 = vcmp.lt.f32.partialorder %v521, 4.0
    %vm566 = vcmp.lt.f32.partialorder %v524, 4.0
    %vm567 = vcmp.lt.f32.partialorder %v527, 4.0
    %vm568 = vcmp.lt.f32.partialorder %v530, 4.0
    %vm569 = vcmp.lt.f32.partialorder %v533, 4.0
    %vm570 = vcmp.lt.f32.partialorder %v536, 4.0
    %vm571 = vcmp.lt.f32.partialorder %v539, 4.0
    %vm572 = vcmp.lt.f32.partialorder %v542, 4.0
    %vm573 = vcmp.lt.f32.partialorder %v545, 4.0
    %vm574 = vcmp.lt.f32.partialorder %v548, 4.0
    %vm575 = vcmp.lt.f32.partialorder %v551, 4.0
    %vm576 = vcmp.lt.f32.partialorder %v554, 4.0
    %vm577 = vcmp.lt.f32.partialorder %v557, 4.0
    %vm578 = vcmp.lt.f32.partialorder %v560, 4.0
    %vm579 = vcmp.lt.f32.partialorder %v563, 4.0
    %v580 = vsel %vm564, 1, 0
    %v581 = vsel %vm565, 1, 0
    %v582 = vsel %vm566, 1, 0
    %v583 = vsel %vm567, 1, 0
    %v584 = vsel %vm568, 1, 0
    %v585 = vsel %vm569, 1, 0
    %v586 = vsel %vm570, 1, 0
    %v587 = vsel %vm571, 1, 0
    %v588 = vsel %vm572, 1, 0
    %v589 = vsel %vm573, 1, 0
    %v590 = vsel %vm574, 1, 0
    %v591 = vsel %vm575, 1, 0
    %v592 = vsel %vm576, 1, 0
    %v593 = vsel %vm577, 1, 0
    %v594 = vsel %vm578, 1, 0
    %v595 = vsel %vm579, 1, 0
    %v596 = vcvt.s32.f32 %v580
    %v597 = vcvt.s32.f32 %v581
    %v598 = vcvt.s32.f32 %v582
    %v599 = vcvt.s32.f32 %v583
    %v600 = vcvt.s32.f32 %v584
    %v601 = vcvt.s32.f32 %v585
    %v602 = vcvt.s32.f32 %v586
    %v603 = vcvt.s32.f32 %v587
    %v604 = vcvt.s32.f32 %v588
    %v605 = vcvt.s32.f32 %v589
    %v606 = vcvt.s32.f32 %v590
    %v607 = vcvt.s32.f32 %v591
    %v608 = vcvt.s32.f32 %v592
    %v609 = vcvt.s32.f32 %v593
    %v610 = vcvt.s32.f32 %v594
    %v611 = vcvt.s32.f32 %v595
    %v628 = vlaneseq
    %v629 = vand.u32 %v628, 127
    %v630 = vlaneseq
    %v631 = vshrl.u32 %v630, 7
    %v632 = vsub.s32 %v629, %v631
    %v633 = vrot.slane %v596, %v632
    %v634 = vlaneseq
    %v635 = vshrl.u32 %v634, 7
    %v636 = vsub.s32 %v629, %v635
    %v637 = vrot.slane %v597, %v636
    %v638 = vlaneseq
    %v639 = vshrl.u32 %v638, 7
    %v640 = vsub.s32 %v629, %v639
    %v641 = vrot.slane %v598, %v640
    %v642 = vlaneseq
    %v643 = vshrl.u32 %v642, 7
    %v644 = vsub.s32 %v629, %v643
    %v645 = vrot.slane %v599, %v644
    %v646 = vlaneseq
    %v647 = vshrl.u32 %v646, 7
    %v648 = vsub.s32 %v629, %v647
    %v649 = vrot.slane %v600, %v648
    %v650 = vlaneseq
    %v651 = vshrl.u32 %v650, 7
    %v652 = vsub.s32 %v629, %v651
    %v653 = vrot.slane %v601, %v652
    %v654 = vlaneseq
    %v655 = vshrl.u32 %v654, 7
    %v656 = vsub.s32 %v629, %v655
    %v657 = vrot.slane %v602, %v656
    %v658 = vlaneseq
    %v659 = vshrl.u32 %v658, 7
    %v660 = vsub.s32 %v629, %v659
    %v661 = vrot.slane %v603, %v660
    %v662 = vlaneseq
    %v663 = vshrl.u32 %v662, 7
    %v664 = vsub.s32 %v629, %v663
    %v665 = vrot.slane %v604, %v664
    %v666 = vlaneseq
    %v667 = vshrl.u32 %v666, 7
    %v668 = vsub.s32 %v629, %v667
    %v669 = vrot.slane %v605, %v668
    %v670 = vlaneseq
    %v671 = vshrl.u32 %v670, 7
    %v672 = vsub.s32 %v629, %v671
    %v673 = vrot.slane %v606, %v672
    %v674 = vlaneseq
    %v675 = vshrl.u32 %v674, 7
    %v676 = vsub.s32 %v629, %v675
    %v677 = vrot.slane %v607, %v676
    %v678 = vlaneseq
    %v679 = vshrl.u32 %v678, 7
    %v680 = vsub.s32 %v629, %v679
    %v681 = vrot.slane %v608, %v680
    %v682 = vlaneseq
    %v683 = vshrl.u32 %v682, 7
    %v684 = vsub.s32 %v629, %v683
    %v685 = vrot.slane %v609, %v684
    %v686 = vlaneseq
    %v687 = vshrl.u32 %v686, 7
    %v688 = vsub.s32 %v629, %v687
    %v689 = vrot.slane %v610, %v688
    %v690 = vlaneseq
    %v691 = vshrl.u32 %v690, 7
    %v692 = vsub.s32 %v629, %v691
    %v693 = vrot.slane %v611, %v692
    %vm694 = vcmask 1041409
    %v695 = vsel %vm694, %v637, %v633
    %vm696 = vcmask 1042434
    %v697 = vsel %vm696, %v641, %v695
    %vm698 = vcmask 1043459
    %v699 = vsel %vm698, %v645, %v697
    %vm700 = vcmask 1044484
    %v701 = vsel %vm700, %v649, %v699
    %vm702 = vcmask 1045509
    %v703 = vsel %vm702, %v653, %v701
    %vm704 = vcmask 1046534
    %v705 = vsel %vm704, %v657, %v703
    %vm706 = vcmask 1047559
    %v707 = vsel %vm706, %v661, %v705
    %v708 = vsel %vm694, %v669, %v665
    %v709 = vsel %vm696, %v673, %v708
    %v710 = vsel %vm698, %v677, %v709
    %v711 = vsel %vm700, %v681, %v710
    %v712 = vsel %vm702, %v685, %v711
    %v713 = vsel %vm704, %v689, %v712
    %v714 = vsel %vm706, %v693, %v713
    %v717 = vsel %vm515, %v707, 0.0
    %718 = vadd.xlane.f32.xlu0 %v717
    %v719 = vpop.xlane.xlu0 %718
    %v720 = vsel %vm515, %v714, 0.0
    %721 = vadd.xlane.f32.xlu0 %v720
    %v722 = vpop.xlane.xlu0 %721
    %v723 = vrsqrt.pop %v719
    %v724 = vrsqrt.pop %v722
    %v725 = vld [vmem:[%s2] sm:$0xff]
    %v726 = vld [vmem:[%s2 + $0x8] sm:$0xff]
    %v727 = vld [vmem:[%s2 + $0x10] sm:$0xff]
    %v728 = vld [vmem:[%s2 + $0x18] sm:$0xff]
    %v729 = vld [vmem:[%s3] sm:$0x1]
    %v731 = vlaneseq
    %v732 = vshrl.u32 %v731, 7
    %v733 = vsub.s32 0, %v732
    %v734 = vrot.slane %v729, %v733
    %736 = vmatprep.subr.mxu0 0.0
    %737 = vmatpush1.msra.mxu0 %v725
    %738 = vmatprep.subr.mxu0 0.0
    %739 = vmatpush1.msra.mxu0 %v726
    %740 = vmatprep.subr.mxu0 0.0
    %741 = vmatpush1.msra.mxu0 %v727
    %742 = vmatprep.subr.mxu0 0.0
    %743 = vmatpush1.msra.mxu0 %v728
    %744 = vmatprep.subr.mxu0 0.0
    %745 = vmatpush1.msra.mxu0 0.0
    %746 = vmatprep.subr.mxu0 0.0
    %747 = vmatpush1.msra.mxu0 0.0
    %748 = vmatprep.subr.mxu0 0.0
    %749 = vmatpush1.msra.mxu0 0.0
    %750 = vmatprep.subr.mxu0 0.0
    %751 = vmatpush1.msra.mxu0 0.0
    %752 = vmatprep.subr.mxu0 0.0
    %753 = vmatpush1.msra.mxu0 0.0
    %754 = vmatprep.subr.mxu0 0.0
    %755 = vmatpush1.msra.mxu0 0.0
    %756 = vmatprep.subr.mxu0 0.0
    %757 = vmatpush1.msra.mxu0 0.0
    %758 = vmatprep.subr.mxu0 0.0
    %759 = vmatpush1.msra.mxu0 0.0
    %760 = vmatprep.subr.mxu0 0.0
    %761 = vmatpush1.msra.mxu0 0.0
    %762 = vmatprep.subr.mxu0 0.0
    %763 = vmatpush1.msra.mxu0 0.0
    %764 = vmatprep.subr.mxu0 0.0
    %765 = vmatpush1.msra.mxu0 0.0
    %766 = vmatprep.subr.mxu0 0.0
    %767 = vmatpush1.msra.mxu0 0.0
    %768 = vmatprep.subr.mxu0 0.0
    %769 = vmatpush1.msra.mxu0 0.0
    %770 = vmatprep.subr.mxu0 0.0
    %771 = vmatpush1.msra.mxu0 0.0
    %772 = vmatprep.subr.mxu0 0.0
    %773 = vmatpush1.msra.mxu0 0.0
    %774 = vmatprep.subr.mxu0 0.0
    %775 = vmatpush1.msra.mxu0 0.0
    %776 = vmatprep.subr.mxu0 0.0
    %777 = vmatpush1.msra.mxu0 0.0
    %778 = vmatprep.subr.mxu0 0.0
    %779 = vmatpush1.msra.mxu0 0.0
    %780 = vmatprep.subr.mxu0 0.0
    %781 = vmatpush1.msra.mxu0 0.0
    %782 = vmatprep.subr.mxu0 0.0
    %783 = vmatpush1.msra.mxu0 0.0
    %784 = vmatprep.subr.mxu0 0.0
    %785 = vmatpush1.msra.mxu0 0.0
    %786 = vmatprep.subr.mxu0 0.0
    %787 = vmatpush1.msra.mxu0 0.0
    %788 = vmatprep.subr.mxu0 0.0
    %789 = vmatpush1.msra.mxu0 0.0
    %790 = vmatprep.subr.mxu0 0.0
    %791 = vmatpush1.msra.mxu0 0.0
    %792 = vmatprep.subr.mxu0 0.0
    %793 = vmatpush1.msra.mxu0 0.0
    %794 = vmatprep.subr.mxu0 0.0
    %795 = vmatpush1.msra.mxu0 0.0
    %796 = vmatprep.subr.mxu0 0.0
    %797 = vmatpush1.msra.mxu0 0.0
    %798 = vmatprep.subr.mxu0 0.0
    %799 = vmatpush1.msra.mxu0 0.0
    %800 = vmatprep.mubr.f32.mxu0 0.0
    %801 = vmatmul.mubr.f32.gmra.mrb[0].mxu0 %v30
    %v802 = vpop.f32.mrb[0].mxu0
    %v803 = vadd.f32 %v734, %v802
    %v804 = vpop.f32.mrb[0].mxu0
    %805 = vmatprep.mubr.f32.mxu0 0.0
    %806 = vmatmul.mubr.f32.gmra.mrb[0].mxu0 %v103
    %v807 = vpop.f32.mrb[0].mxu0
    %v808 = vadd.f32 %v734, %v807
    %v809 = vpop.f32.mrb[0].mxu0
    %810 = vdwg.mxu0
    %v811 = vmul.f32 %v803, %v723
    %v812 = vmul.f32 %v808, %v724
    %814 = vrot.lane.b32.xlu0 %v811, 96
    %v815 = vpop.permute.xlu0 %814
    %v817 = vsel %vm515, %v707, 0
    %819 = vmatprep.subr.mxu0 0.0
    %820 = vmatpush1.msra.mxu0 %v815
    %821 = vmatprep.subr.mxu0 0.0
    %822 = vmatpush1.msra.mxu0 0.0
    %823 = vmatprep.subr.mxu0 0.0
    %824 = vmatpush1.msra.mxu0 0.0
    %825 = vmatprep.subr.mxu0 0.0
    %826 = vmatpush1.msra.mxu0 0.0
    %827 = vmatprep.subr.mxu0 0.0
    %828 = vmatpush1.msra.mxu0 0.0
    %829 = vmatprep.subr.mxu0 0.0
    %830 = vmatpush1.msra.mxu0 0.0
    %831 = vmatprep.subr.mxu0 0.0
    %832 = vmatpush1.msra.mxu0 0.0
    %833 = vmatprep.subr.mxu0 0.0
    %834 = vmatpush1.msra.mxu0 0.0
    %835 = vmatprep.subr.mxu0 0.0
    %836 = vmatpush1.msra.mxu0 0.0
    %837 = vmatprep.subr.mxu0 0.0
    %838 = vmatpush1.msra.mxu0 0.0
    %839 = vmatprep.subr.mxu0 0.0
    %840 = vmatpush1.msra.mxu0 0.0
    %841 = vmatprep.subr.mxu0 0.0
    %842 = vmatpush1.msra.mxu0 0.0
    %843 = vmatprep.subr.mxu0 0.0
    %844 = vmatpush1.msra.mxu0 0.0
    %845 = vmatprep.subr.mxu0 0.0
    %846 = vmatpush1.msra.mxu0 0.0
    %847 = vmatprep.subr.mxu0 0.0
    %848 = vmatpush1.msra.mxu0 0.0
    %849 = vmatprep.subr.mxu0 0.0
    %850 = vmatpush1.msra.mxu0 0.0
    %851 = vmatprep.subr.mxu0 0.0
    %852 = vmatpush1.msra.mxu0 0.0
    %853 = vmatprep.subr.mxu0 0.0
    %854 = vmatpush1.msra.mxu0 0.0
    %855 = vmatprep.subr.mxu0 0.0
    %856 = vmatpush1.msra.mxu0 0.0
    %857 = vmatprep.subr.mxu0 0.0
    %858 = vmatpush1.msra.mxu0 0.0
    %859 = vmatprep.subr.mxu0 0.0
    %860 = vmatpush1.msra.mxu0 0.0
    %861 = vmatprep.subr.mxu0 0.0
    %862 = vmatpush1.msra.mxu0 0.0
    %863 = vmatprep.subr.mxu0 0.0
    %864 = vmatpush1.msra.mxu0 0.0
    %865 = vmatprep.subr.mxu0 0.0
    %866 = vmatpush1.msra.mxu0 0.0
    %867 = vmatprep.subr.mxu0 0.0
    %868 = vmatpush1.msra.mxu0 0.0
    %869 = vmatprep.subr.mxu0 0.0
    %870 = vmatpush1.msra.mxu0 0.0
    %871 = vmatprep.subr.mxu0 0.0
    %872 = vmatpush1.msra.mxu0 0.0
    %873 = vmatprep.subr.mxu0 0.0
    %874 = vmatpush1.msra.mxu0 0.0
    %875 = vmatprep.subr.mxu0 0.0
    %876 = vmatpush1.msra.mxu0 0.0
    %877 = vmatprep.subr.mxu0 0.0
    %878 = vmatpush1.msra.mxu0 0.0
    %879 = vmatprep.subr.mxu0 0.0
    %880 = vmatpush1.msra.mxu0 0.0
    %881 = vmatprep.subr.mxu0 0.0
    %882 = vmatpush1.msra.mxu0 0.0
    %883 = vmatprep.mubr.f32.mxu0 0.0
    %884 = vmatmul.mubr.f32.gmra.mrb[0].mxu0 %v817
    %v885 = vpop.f32.mrb[0].mxu0
    %v886 = vadd.f32 0.0, %v885
    %v887 = vpop.f32.mrb[0].mxu0
    %888 = vdwg.mxu0
    %890 = vrot.lane.b32.xlu0 %v812, 96
    %v891 = vpop.permute.xlu0 %890
    %v893 = vsel %vm515, %v714, 0
    %895 = vmatprep.subr.mxu0 0.0
    %896 = vmatpush1.msra.mxu0 %v891
    %897 = vmatprep.subr.mxu0 0.0
    %898 = vmatpush1.msra.mxu0 0.0
    %899 = vmatprep.subr.mxu0 0.0
    %900 = vmatpush1.msra.mxu0 0.0
    %901 = vmatprep.subr.mxu0 0.0
    %902 = vmatpush1.msra.mxu0 0.0
    %903 = vmatprep.subr.mxu0 0.0
    %904 = vmatpush1.msra.mxu0 0.0
    %905 = vmatprep.subr.mxu0 0.0
    %906 = vmatpush1.msra.mxu0 0.0
    %907 = vmatprep.subr.mxu0 0.0
    %908 = vmatpush1.msra.mxu0 0.0
    %909 = vmatprep.subr.mxu0 0.0
    %910 = vmatpush1.msra.mxu0 0.0
    %911 = vmatprep.subr.mxu0 0.0
    %912 = vmatpush1.msra.mxu0 0.0
    %913 = vmatprep.subr.mxu0 0.0
    %914 = vmatpush1.msra.mxu0 0.0
    %915 = vmatprep.subr.mxu0 0.0
    %916 = vmatpush1.msra.mxu0 0.0
    %917 = vmatprep.subr.mxu0 0.0
    %918 = vmatpush1.msra.mxu0 0.0
    %919 = vmatprep.subr.mxu0 0.0
    %920 = vmatpush1.msra.mxu0 0.0
    %921 = vmatprep.subr.mxu0 0.0
    %922 = vmatpush1.msra.mxu0 0.0
    %923 = vmatprep.subr.mxu0 0.0
    %924 = vmatpush1.msra.mxu0 0.0
    %925 = vmatprep.subr.mxu0 0.0
    %926 = vmatpush1.msra.mxu0 0.0
    %927 = vmatprep.subr.mxu0 0.0
    %928 = vmatpush1.msra.mxu0 0.0
    %929 = vmatprep.subr.mxu0 0.0
    %930 = vmatpush1.msra.mxu0 0.0
    %931 = vmatprep.subr.mxu0 0.0
    %932 = vmatpush1.msra.mxu0 0.0
    %933 = vmatprep.subr.mxu0 0.0
    %934 = vmatpush1.msra.mxu0 0.0
    %935 = vmatprep.subr.mxu0 0.0
    %936 = vmatpush1.msra.mxu0 0.0
    %937 = vmatprep.subr.mxu0 0.0
    %938 = vmatpush1.msra.mxu0 0.0
    %939 = vmatprep.subr.mxu0 0.0
    %940 = vmatpush1.msra.mxu0 0.0
    %941 = vmatprep.subr.mxu0 0.0
    %942 = vmatpush1.msra.mxu0 0.0
    %943 = vmatprep.subr.mxu0 0.0
    %944 = vmatpush1.msra.mxu0 0.0
    %945 = vmatprep.subr.mxu0 0.0
    %946 = vmatpush1.msra.mxu0 0.0
    %947 = vmatprep.subr.mxu0 0.0
    %948 = vmatpush1.msra.mxu0 0.0
    %949 = vmatprep.subr.mxu0 0.0
    %950 = vmatpush1.msra.mxu0 0.0
    %951 = vmatprep.subr.mxu0 0.0
    %952 = vmatpush1.msra.mxu0 0.0
    %953 = vmatprep.subr.mxu0 0.0
    %954 = vmatpush1.msra.mxu0 0.0
    %955 = vmatprep.subr.mxu0 0.0
    %956 = vmatpush1.msra.mxu0 0.0
    %957 = vmatprep.subr.mxu0 0.0
    %958 = vmatpush1.msra.mxu0 0.0
    %959 = vmatprep.mubr.f32.mxu0 0.0
    %960 = vmatmul.mubr.f32.gmra.mrb[0].mxu0 %v893
    %v961 = vpop.f32.mrb[0].mxu0
    %v962 = vadd.f32 0.0, %v961
    %v963 = vpop.f32.mrb[0].mxu0
    %964 = vdwg.mxu0
    %v965 = vmul.f32 %v886, %v723
    %v966 = vmul.f32 %v962, %v724
    %v967 = vadd.f32 %v965, %v803
    %v968 = vadd.f32 %v966, %v808
    %v969 = vsel %vm28, %v967, 0.0
    %970 = vadd.xlane.f32.xlu0 %v969
    %v971 = vpop.xlane.xlu0 %970
    %v972 = vsel %vm28, %v968, 0.0
    %973 = vadd.xlane.f32.xlu0 %v972
    %v974 = vpop.xlane.xlu0 %973
    %v975 = vadd.f32 %v971, %v974
    %v976 = vmul.f32 %v967, %v967
    %v977 = vmul.f32 %v968, %v968
    %v978 = vsel %vm28, %v976, 0.0
    %979 = vadd.xlane.f32.xlu0 %v978
    %v980 = vpop.xlane.xlu0 %979
    %v981 = vsel %vm28, %v977, 0.0
    %982 = vadd.xlane.f32.xlu0 %v981
    %v983 = vpop.xlane.xlu0 %982
    %v984 = vadd.f32 %v980, %v983
    %v985 = vrcp.pop 64.0
    %v986 = vmul.f32 %v975, %v985
    %v987 = vmul.f32 %v984, %v985
    %v988 = vmul.f32 %v986, %v986
    %v989 = vsub.f32 %v987, %v988
    %v990 = vsub.f32 %v967, %v986
    %v991 = vsub.f32 %v968, %v986
    %v992 = vadd.f32 %v989, 1e-05
    %v993 = vrsqrt.pop %v992
    %v994 = vmul.f32 %v990, %v993
    %v995 = vmul.f32 %v991, %v993
    %v996 = vadd.f32 %v18, %v994
    %v997 = vadd.f32 %v19, %v995
    %v998 = vmax.f32 %v996, 0.0
    %v999 = vmax.f32 %v997, 0.0
    %v1000 = vcombine.high %v998, 0.0
    %v1002 = vunpack.c.l.s4 1983009808
    %v1003 = vunpack.c.0.s8 %v1002
    %v1004 = vlaneseq
    %v1005 = vshrl.u32 %v1004, 7
    %v1006 = vsub.s32 %v1003, %v1005
    %v1007 = vrot.slane %v998, %v1006
    %v1009 = vunpack.c.l.s4 1983009808
    %v1010 = vunpack.c.0.s8 %v1009
    %v1011 = vlaneseq
    %v1012 = vshrl.u32 %v1011, 7
    %v1013 = vsub.s32 %v1010, %v1012
    %v1014 = vrot.slane %v1000, %v1013
    %v1015 = vcombine.high %v999, 0.0
    %v1017 = vunpack.c.l.s4 1983009808
    %v1018 = vunpack.c.0.s8 %v1017
    %v1019 = vlaneseq
    %v1020 = vshrl.u32 %v1019, 7
    %v1021 = vsub.s32 %v1018, %v1020
    %v1022 = vrot.slane %v999, %v1021
    %v1024 = vunpack.c.l.s4 1983009808
    %v1025 = vunpack.c.0.s8 %v1024
    %v1026 = vlaneseq
    %v1027 = vshrl.u32 %v1026, 7
    %v1028 = vsub.s32 %v1025, %v1027
    %v1029 = vrot.slane %v1015, %v1028
    %v1030 = vcombine.low %v1007, %v1022
    %v1031 = vcombine.high %v1007, %v1022
    %v1033 = vunpack.c.l.s4 1934713408
    %v1034 = vunpack.c.0.s8 %v1033
    %v1035 = vlaneseq
    %v1036 = vshrl.u32 %v1035, 7
    %v1037 = vsub.s32 %v1034, %v1036
    %v1038 = vrot.slane %v1030, %v1037
    %v1040 = vunpack.c.l.s4 1934713408
    %v1041 = vunpack.c.0.s8 %v1040
    %v1042 = vlaneseq
    %v1043 = vshrl.u32 %v1042, 7
    %v1044 = vsub.s32 %v1041, %v1043
    %v1045 = vrot.slane %v1031, %v1044
    %v1046 = vcombine.low %v1014, %v1029
    %v1047 = vcombine.high %v1014, %v1029
    %v1049 = vunpack.c.l.s4 1934713408
    %v1050 = vunpack.c.0.s8 %v1049
    %v1051 = vlaneseq
    %v1052 = vshrl.u32 %v1051, 7
    %v1053 = vsub.s32 %v1050, %v1052
    %v1054 = vrot.slane %v1046, %v1053
    %v1056 = vunpack.c.l.s4 1934713408
    %v1057 = vunpack.c.0.s8 %v1056
    %v1058 = vlaneseq
    %v1059 = vshrl.u32 %v1058, 7
    %v1060 = vsub.s32 %v1057, %v1059
    %v1061 = vrot.slane %v1047, %v1060
    %v1062 = vcombine.high %v1038, 0.0
    %v1063 = vcombine.high %v1045, 0.0
    %v1064 = vcombine.high %v1054, 0.0
    %v1065 = vcombine.high %v1061, 0.0
    %1067 = vrot.lane.b32.xlu0 %v1062, 32
    %v1068 = vpop.permute.xlu0 %1067
    %1071 = vrot.lane.b32.xlu0 %v1045, 64
    %v1072 = vpop.permute.xlu0 %1071
    %1075 = vrot.lane.b32.xlu0 %v1063, 96
    %v1076 = vpop.permute.xlu0 %1075
    %1079 = vrot.lane.b32.xlu0 %v1064, 32
    %v1080 = vpop.permute.xlu0 %1079
    %1083 = vrot.lane.b32.xlu0 %v1061, 64
    %v1084 = vpop.permute.xlu0 %1083
    %1087 = vrot.lane.b32.xlu0 %v1065, 96
    %v1088 = vpop.permute.xlu0 %1087
    %v1090 = vsel %vm28, %v1038, %v1068
    %vm1091 = vcmask 523264
    %v1092 = vsel %vm1091, %v1090, %v1072
    %vm1093 = vcmask 785408
    %v1094 = vsel %vm1093, %v1092, %v1076
    %v1095 = vsel %vm28, %v1054, %v1080
    %v1096 = vsel %vm1091, %v1095, %v1084
    %v1097 = vsel %vm1093, %v1096, %v1088
    %v1100 = vcombine.low %v1094, %v1097
    %v1102 = vunpack.c.l.s4 1983009808
    %v1103 = vunpack.c.0.s8 %v1102
    %v1104 = vlaneseq
    %v1105 = vshrl.u32 %v1104, 7
    %v1106 = vsub.s32 %v1103, %v1105
    %v1107 = vrot.slane %v1100, %v1106
    %1109 = vst [vmem:[#allocation2] sm:$0xf] %v1107
    // Predicated region
    $region18: #{tpu_custom_call.1} parent=1 // pred_check
      _
    $region19: #{tpu_custom_call.1} parent=1 // pred_check_branch
      %1111 = sbr.rel (0) target = $region21
    $region20: #{tpu_custom_call.1} parent=1 // pred_region
      %s1113 = ssub.s32 64, 64
      %1114 = vsyncadd [#allocation3], %s1113
      %s1116 = sshll.u32 [#allocation2], 4
      %s1117 = int_to_ptr.vmem [resolvable:$true] %s1116
      %1119 = dma.vmem_to_hbm [thread:$0]  %s1117, 64, %s4, [#allocation3]
    $region21: #{tpu_custom_call.1} parent=1 // pred_fallthru
      _
    // Predicated region
    $region22: #{tpu_custom_call.1} parent=1 // pred_check
      _
    $region23: #{tpu_custom_call.1} parent=1 // pred_check_branch
      %1121 = sbr.rel (0) target = $region25
    $region24: #{tpu_custom_call.1} parent=1 // pred_region
      %1122 = dma.done [#allocation3], 64
    $region25: #{tpu_custom_call.1} parent=1 // pred_fallthru
      _
    %1123 = vsyncpa [#allocation3], 1

</llo_original>
